<compile_context>
chip_gen: v7x
topology: tpu7x:2x2x1
jax: 0.10.0
libtpu: 0.0.40
codegen_flags: <defaults>
</compile_context>

<pallas_src>
import jax
import jax.numpy as jnp
from jax.experimental import pallas as pl
from jax.experimental.pallas import tpu as pltpu


_CHUNK = 8  # source points processed per inner iteration (one sublane group)


# ----------------------------------------------------------------------------
# Parameter setup (plain JAX glue): Rodrigues / so3 exponential map
# ----------------------------------------------------------------------------
def so3_exp_map(log_rot, eps=1e-4):
    """log_rot: (B, 3) -> (B, 3, 3) rotation matrices (pytorch3d semantics)."""
    nrms = jnp.sum(log_rot * log_rot, axis=-1)
    rot_angles = jnp.sqrt(jnp.clip(nrms, eps))
    inv = 1.0 / rot_angles
    fac1 = inv * jnp.sin(rot_angles)
    fac2 = inv * inv * (1.0 - jnp.cos(rot_angles))

    wx, wy, wz = log_rot[..., 0], log_rot[..., 1], log_rot[..., 2]
    zeros = jnp.zeros_like(wx)
    skew = jnp.stack(
        [
            jnp.stack([zeros, -wz, wy], axis=-1),
            jnp.stack([wz, zeros, -wx], axis=-1),
            jnp.stack([-wy, wx, zeros], axis=-1),
        ],
        axis=-2,
    )  # (B, 3, 3)
    skew_sq = jnp.einsum("bij,bjk->bik", skew, skew,
                         precision=jax.lax.Precision.HIGHEST)
    eye = jnp.eye(3, dtype=log_rot.dtype)[None]
    return fac1[:, None, None] * skew + fac2[:, None, None] * skew_sq + eye


# ----------------------------------------------------------------------------
# Pallas kernel: per-source-point min_t ( ||y_t||^2 - 2 y_t . x_s )
# ----------------------------------------------------------------------------
def _knn_min_kernel(src_ref, tgt_ref, dmin_ref):
    # src_ref : (1, TS, 4)  rows = [-2*x0, -2*x1, -2*x2, 0]  (point-major, tiny,
    #                        re-DMAed only once per (b, i) source tile)
    # tgt_ref : (1, 4, TT)  lane-dense rows = [y0, y1, y2, ||y||^2]
    # dmin_ref: (1, TS, 1)  resident running min across the Nt-tile axis
    j = pl.program_id(2)

    @pl.when(j == 0)
    def _init():
        dmin_ref[0] = jnp.full(dmin_ref.shape[1:], jnp.inf, dmin_ref.dtype)

    y0 = tgt_ref[0, 0:1, :]   # (1, TT)
    y1 = tgt_ref[0, 1:2, :]
    y2 = tgt_ref[0, 2:3, :]
    ny = tgt_ref[0, 3:4, :]   # ||y||^2  (+inf on padded targets)

    n_chunks = src_ref.shape[1] // _CHUNK   # static

    def body(c, carry):
        s0 = pl.multiple_of(c * _CHUNK, _CHUNK)
        xc = src_ref[0, pl.ds(s0, _CHUNK), :]                    # (8, 4)
        # part[s, t] = ||y_t||^2 - 2 * y_t . x_s   -- (8, TT) strip, stays in vregs
        part = (xc[:, 0:1] * y0
                + xc[:, 1:2] * y1
                + xc[:, 2:3] * y2
                + ny)                                            # (8, TT)
        m = jnp.min(part, axis=1, keepdims=True)                 # (8, 1)
        cur = dmin_ref[0, pl.ds(s0, _CHUNK), :]                  # (8, 1)
        dmin_ref[0, pl.ds(s0, _CHUNK), :] = jnp.minimum(cur, m)
        return carry

    jax.lax.fori_loop(0, n_chunks, body, 0)


# ----------------------------------------------------------------------------
# Wrapper reproducing PointCloudFitter.forward
# ----------------------------------------------------------------------------
def _round_up(x, m):
    return ((x + m - 1) // m) * m


def point_cloud_fitter_forward(source_pcd, target_pcd, initial_rot, initial_trans,
                               *, ts=512, tt=2048):
    """source_pcd: (B, Ns, 3), target_pcd: (B, Nt, 3) -> (transformed, loss)."""
    B, Ns, _ = source_pcd.shape
    Nt = target_pcd.shape[1]
    in_dtype = source_pcd.dtype

    # ---- parameter setup + rigid transform (trivial XLA work) ---------------
    rot_params = jnp.broadcast_to(initial_rot[None, :], (B, 3))
    trans_params = jnp.broadcast_to(initial_trans[None, :], (B, 3))
    R = so3_exp_map(rot_params)                                   # (B, 3, 3)
    transformed = (jnp.einsum("bij,bnj->bni", R, source_pcd,
                              precision=jax.lax.Precision.HIGHEST)
                   + trans_params[:, None, :]).astype(in_dtype)   # (B, Ns, 3)

    # ---- centre both clouds (numerics; squared distances are unchanged) -----
    centroid = jnp.mean(target_pcd.astype(jnp.float32), axis=1, keepdims=True)
    xc = transformed.astype(jnp.float32) - centroid               # (B, Ns, 3)
    yc = target_pcd.astype(jnp.float32) - centroid                # (B, Nt, 3)
    nx = jnp.sum(xc * xc, axis=-1)                                # (B, Ns)
    ny = jnp.sum(yc * yc, axis=-1)                                # (B, Nt)

    # ---- tile selection ------------------------------------------------------
    TS = _round_up(min(ts, _round_up(Ns, _CHUNK)), _CHUNK)
    n_src_tiles = -(-Ns // TS)
    # v7x: 2 TensorCores -- expose at least two parallel blocks when possible.
    if B * n_src_tiles < 2 and Ns > _CHUNK:
        TS = _round_up(-(-Ns // 2), _CHUNK)
    TT = _round_up(min(tt, _round_up(Nt, 128)), 128)
    Ns_p = _round_up(Ns, TS)
    Nt_p = _round_up(Nt, TT)

    # Source operand: point-major -2*x, last dim padded 3 -> 4 (16-byte rows).
    src4 = jnp.pad(-2.0 * xc, ((0, 0), (0, Ns_p - Ns), (0, 1)))   # (B, Ns_p, 4)

    # Target operand: lane-dense rows [y0, y1, y2, ||y||^2]; padded target
    # columns get coordinates 0 and ||y||^2 = +inf so they never win the min.
    tgt4 = jnp.concatenate([jnp.swapaxes(yc, -1, -2), ny[:, None, :]],
                           axis=1)                                # (B, 4, Nt)
    if Nt_p != Nt:
        pad = jnp.concatenate(
            [jnp.zeros((B, 3, Nt_p - Nt), jnp.float32),
             jnp.full((B, 1, Nt_p - Nt), jnp.inf, jnp.float32)], axis=1)
        tgt4 = jnp.concatenate([tgt4, pad], axis=2)               # (B, 4, Nt_p)

    grid = (B, Ns_p // TS, Nt_p // TT)

    grid_spec = pltpu.PrefetchScalarGridSpec(
        num_scalar_prefetch=0,
        grid=grid,
        in_specs=[
            pl.BlockSpec((1, TS, 4), lambda b, i, j: (b, i, 0)),   # -2*x (rare DMA)
            pl.BlockSpec((1, 4, TT), lambda b, i, j: (b, 0, j)),   # target, lane-dense
        ],
        out_specs=pl.BlockSpec((1, TS, 1), lambda b, i, j: (b, i, 0)),
    )

    dmin = pl.pallas_call(
        _knn_min_kernel,
        out_shape=jax.ShapeDtypeStruct((B, Ns_p, 1), jnp.float32),
        grid_spec=grid_spec,
        compiler_params=pltpu.CompilerParams(
            dimension_semantics=("parallel", "parallel", "arbitrary"),
            vmem_limit_bytes=32 * 1024 * 1024),
    )(src4, tgt4)

    # Add ||x||^2 and clamp (expansion can go slightly negative for
    # near-coincident points).
    dists = jnp.maximum(dmin[:, :Ns, 0] + nx, 0.0)                # (B, Ns)
    loss = jnp.mean(dists)
    return transformed, loss


# ----------------------------------------------------------------------------
# Pure-JAX reference (sanity check only)
# ----------------------------------------------------------------------------
def _reference_forward(source_pcd, target_pcd, initial_rot, initial_trans):
    B = source_pcd.shape[0]
    R = so3_exp_map(jnp.broadcast_to(initial_rot[None, :], (B, 3)))
    t = jnp.broadcast_to(initial_trans[None, :], (B, 3))
    xf = jnp.einsum("bij,bnj->bni", R, source_pcd,
                    precision=jax.lax.Precision.HIGHEST) + t[:, None, :]
    diff = xf[:, :, None, :] - target_pcd[:, None, :, :]          # (B, Ns, Nt, 3)
    d = jnp.sum(diff * diff, axis=-1)                             # (B, Ns, Nt)
    dmin = jnp.min(d, axis=-1, keepdims=True)                     # (B, Ns, 1)
    return xf, jnp.mean(dmin)


if __name__ == "__main__":
    key = jax.random.PRNGKey(0)
    k_src, k_tgt, k_rot, k_trans = jax.random.split(key, 4)

    # Module __init__ uses zeros; use small deterministic non-zero values so
    # the rotation / translation path is actually exercised.
    initial_rot = 0.1 * jax.random.normal(k_rot, (3,), jnp.float32)
    initial_trans = 0.1 * jax.random.normal(k_trans, (3,), jnp.float32)

    # Config 1: small clouds, single tile per batch element, default tiles.
    B, Ns, Nt = 2, 64, 128
    source = jax.random.normal(k_src, (B, Ns, 3), jnp.float32)
    target = jax.random.normal(k_tgt, (B, Nt, 3), jnp.float32)
    transformed, loss = point_cloud_fitter_forward(
        source, target, initial_rot, initial_trans)
    jax.block_until_ready((transformed, loss))
    xf_ref, loss_ref = _reference_forward(source, target, initial_rot, initial_trans)
    assert jnp.allclose(transformed, xf_ref, atol=1e-4, rtol=1e-4)
    assert jnp.allclose(loss, loss_ref, atol=1e-4, rtol=1e-4)

    # Config 2: exercises Ns/Nt tiling, the min-accumulation across Nt tiles
    # and source/target padding (shapes not multiples of the tile sizes).
    B2, Ns2, Nt2 = 2, 200, 300
    k_src2, k_tgt2 = jax.random.split(k_src)
    source2 = jax.random.normal(k_src2, (B2, Ns2, 3), jnp.float32) + 3.0
    target2 = jax.random.normal(k_tgt2, (B2, Nt2, 3), jnp.float32) + 3.0
    transformed2, loss2 = point_cloud_fitter_forward(
        source2, target2, initial_rot, initial_trans, ts=64, tt=128)
    jax.block_until_ready((transformed2, loss2))
    xf_ref2, loss_ref2 = _reference_forward(source2, target2, initial_rot, initial_trans)
    assert jnp.allclose(transformed2, xf_ref2, atol=1e-4, rtol=1e-4)
    assert jnp.allclose(loss2, loss_ref2, atol=1e-4, rtol=1e-4)

    # Config 3: B=1 exercises the v7x parallel-split of the source axis.
    B3, Ns3, Nt3 = 1, 96, 160
    k_src3, k_tgt3 = jax.random.split(k_tgt)
    source3 = jax.random.normal(k_src3, (B3, Ns3, 3), jnp.float32)
    target3 = jax.random.normal(k_tgt3, (B3, Nt3, 3), jnp.float32)
    transformed3, loss3 = point_cloud_fitter_forward(
        source3, target3, initial_rot, initial_trans)
    jax.block_until_ready((transformed3, loss3))
    xf_ref3, loss_ref3 = _reference_forward(source3, target3, initial_rot, initial_trans)
    assert jnp.allclose(transformed3, xf_ref3, atol=1e-4, rtol=1e-4)
    assert jnp.allclose(loss3, loss_ref3, atol=1e-4, rtol=1e-4)

    print("KERNEL_OK")
</pallas_src>

<mosaic_0001>
module attributes {stable_mosaic.version = 11 : i64} {
  func.func @_knn_min_kernel(%arg0: i32, %arg1: i32, %arg2: i32, %arg3: memref<1x64x4xf32, #tpu.memory_space<vmem>>, %arg4: memref<1x4x128xf32, #tpu.memory_space<vmem>>, %arg5: memref<1x64x1xf32, #tpu.memory_space<vmem>>) attributes {dimension_semantics = [#tpu.dimension_semantics<parallel>, #tpu.dimension_semantics<parallel>, #tpu.dimension_semantics<arbitrary>], iteration_bounds = array<i64: 2, 1, 1>, scalar_prefetch = 0 : i64, scratch_operands = 0 : i64, tpu.core_type = #tpu.core_type<tc>, window_params = [{transform_indices = @transform_0, window_bounds = array<i64: 1, 64, 4>}, {transform_indices = @transform_1, window_bounds = array<i64: 1, 4, 128>}, {transform_indices = @transform_2, window_bounds = array<i64: 1, 64, 1>}]} {
    %c0_i32 = arith.constant 0 : i32
    %0 = arith.cmpi eq, %arg2, %c0_i32 : i32
    %1 = arith.extui %0 : i1 to i32
    %c0_i32_0 = arith.constant 0 : i32
    %2 = arith.cmpi ne, %1, %c0_i32_0 : i32
    scf.if %2 {
      %cst = arith.constant 0x7F800000 : f32
      %12 = vector.broadcast %cst : f32 to vector<64x1xf32>
      %c0_11 = arith.constant 0 : index
      %c0_12 = arith.constant 0 : index
      %c0_13 = arith.constant 0 : index
      %13 = vector.load %arg5[%c0_11, %c0_12, %c0_13] : memref<1x64x1xf32, #tpu.memory_space<vmem>>, vector<1x64x1xf32>
      %14 = vector.shape_cast %13 : vector<1x64x1xf32> to vector<64x1xf32>
      %15 = vector.shape_cast %12 : vector<64x1xf32> to vector<1x64x1xf32>
      tpu.vector_store %arg5[%c0_11, %c0_12, %c0_13], %15 {strides = array<i32>} : memref<1x64x1xf32, #tpu.memory_space<vmem>>, vector<1x64x1xf32>,
    } else {
    }
    %c0 = arith.constant 0 : index
    %c0_1 = arith.constant 0 : index
    %c0_2 = arith.constant 0 : index
    %3 = vector.load %arg4[%c0, %c0_1, %c0_2] : memref<1x4x128xf32, #tpu.memory_space<vmem>>, vector<1x1x128xf32>
    %4 = vector.shape_cast %3 : vector<1x1x128xf32> to vector<1x128xf32>
    %c0_3 = arith.constant 0 : index
    %c1 = arith.constant 1 : index
    %c0_4 = arith.constant 0 : index
    %5 = vector.load %arg4[%c0_3, %c1, %c0_4] : memref<1x4x128xf32, #tpu.memory_space<vmem>>, vector<1x1x128xf32>
    %6 = vector.shape_cast %5 : vector<1x1x128xf32> to vector<1x128xf32>
    %c0_5 = arith.constant 0 : index
    %c2 = arith.constant 2 : index
    %c0_6 = arith.constant 0 : index
    %7 = vector.load %arg4[%c0_5, %c2, %c0_6] : memref<1x4x128xf32, #tpu.memory_space<vmem>>, vector<1x1x128xf32>
    %8 = vector.shape_cast %7 : vector<1x1x128xf32> to vector<1x128xf32>
    %c0_7 = arith.constant 0 : index
    %c3 = arith.constant 3 : index
    %c0_8 = arith.constant 0 : index
    %9 = vector.load %arg4[%c0_7, %c3, %c0_8] : memref<1x4x128xf32, #tpu.memory_space<vmem>>, vector<1x1x128xf32>
    %10 = vector.shape_cast %9 : vector<1x1x128xf32> to vector<1x128xf32>
    %c0_i32_9 = arith.constant 0 : i32
    %c8_i32 = arith.constant 8 : i32
    %11 = arith.addi %c0_i32_9, %c8_i32 : i32
    %c1_i32 = arith.constant 1 : i32
    scf.for %arg6 = %c0_i32_9 to %11 step %c1_i32  : i32 {
      %c8_i32_11 = arith.constant 8 : i32
      %12 = arith.muli %arg6, %c8_i32_11 : i32
      %13 = tpu.assume_multiple %12, 8 : i32
      %c0_12 = arith.constant 0 : index
      %14 = arith.index_cast %13 : i32 to index
      %c0_13 = arith.constant 0 : index
      %15 = vector.load %arg3[%c0_12, %14, %c0_13] : memref<1x64x4xf32, #tpu.memory_space<vmem>>, vector<1x8x4xf32>
      %16 = vector.shape_cast %15 : vector<1x8x4xf32> to vector<8x4xf32>
      %17 = vector.extract_strided_slice %16 {offsets = [0, 0], sizes = [8, 1], strides = [1, 1]} : vector<8x4xf32> to vector<8x1xf32>
      %18 = vector.broadcast %17 : vector<8x1xf32> to vector<8x128xf32>
      %19 = vector.broadcast %4 : vector<1x128xf32> to vector<8x128xf32>
      %20 = arith.mulf %18, %19 : vector<8x128xf32>
      %21 = vector.extract_strided_slice %16 {offsets = [0, 1], sizes = [8, 1], strides = [1, 1]} : vector<8x4xf32> to vector<8x1xf32>
      %22 = vector.broadcast %21 : vector<8x1xf32> to vector<8x128xf32>
      %23 = vector.broadcast %6 : vector<1x128xf32> to vector<8x128xf32>
      %24 = arith.mulf %22, %23 : vector<8x128xf32>
      %25 = arith.addf %20, %24 : vector<8x128xf32>
      %26 = vector.extract_strided_slice %16 {offsets = [0, 2], sizes = [8, 1], strides = [1, 1]} : vector<8x4xf32> to vector<8x1xf32>
      %27 = vector.broadcast %26 : vector<8x1xf32> to vector<8x128xf32>
      %28 = vector.broadcast %8 : vector<1x128xf32> to vector<8x128xf32>
      %29 = arith.mulf %27, %28 : vector<8x128xf32>
      %30 = arith.addf %25, %29 : vector<8x128xf32>
      %31 = vector.broadcast %10 : vector<1x128xf32> to vector<8x128xf32>
      %32 = arith.addf %30, %31 : vector<8x128xf32>
      %cst = arith.constant dense<0x7F800000> : vector<8xf32>
      %33 = vector.multi_reduction <minimumf>, %32, %cst [1] : vector<8x128xf32> to vector<8xf32>
      %34 = vector.shape_cast %33 : vector<8xf32> to vector<8x1xf32>
      %c0_14 = arith.constant 0 : index
      %35 = arith.index_cast %13 : i32 to index
      %c0_15 = arith.constant 0 : index
      %36 = vector.load %arg5[%c0_14, %35, %c0_15] : memref<1x64x1xf32, #tpu.memory_space<vmem>>, vector<1x8x1xf32>
      %37 = vector.shape_cast %36 : vector<1x8x1xf32> to vector<8x1xf32>
      %38 = arith.minimumf %37, %34 : vector<8x1xf32>
      %c0_16 = arith.constant 0 : index
      %39 = arith.index_cast %13 : i32 to index
      %c0_17 = arith.constant 0 : index
      %40 = vector.load %arg5[%c0_16, %39, %c0_17] : memref<1x64x1xf32, #tpu.memory_space<vmem>>, vector<1x8x1xf32>
      %41 = vector.shape_cast %40 : vector<1x8x1xf32> to vector<8x1xf32>
      %42 = vector.shape_cast %38 : vector<8x1xf32> to vector<1x8x1xf32>
      tpu.vector_store %arg5[%c0_16, %39, %c0_17], %42 {strides = array<i32>} : memref<1x64x1xf32, #tpu.memory_space<vmem>>, vector<1x8x1xf32>,
    }
    %c8_i32_10 = arith.constant 8 : i32
    return
  }
  func.func @transform_0(%arg0: i32, %arg1: i32, %arg2: i32) -> (i32, i32, i32) {
    %c0_i32 = arith.constant 0 : i32
    %c0_i32_0 = arith.constant 0 : i32
    return %arg0, %arg1, %c0_i32 : i32, i32, i32
  }
  func.func @transform_1(%arg0: i32, %arg1: i32, %arg2: i32) -> (i32, i32, i32) {
    %c0_i32 = arith.constant 0 : i32
    %c0_i32_0 = arith.constant 0 : i32
    return %arg0, %c0_i32, %arg2 : i32, i32, i32
  }
  func.func @transform_2(%arg0: i32, %arg1: i32, %arg2: i32) -> (i32, i32, i32) {
    %c0_i32 = arith.constant 0 : i32
    %c0_i32_0 = arith.constant 0 : i32
    return %arg0, %arg1, %c0_i32 : i32, i32, i32
  }
}

</mosaic_0001>

<llo_original>
// kernel: tpu_custom_call.1
$region0: #{tpu_custom_call.1}
  #allocation0 [shape = 'u32[]', space=smem, size = 0x4, offset = 0x4, fixed_abs, tag = 'smem constant byte address 0x4 - core index']
  #allocation1 [shape = 'u32[144,128]{1,0:T(1,128)}', space=vmem, size = 0x12000, scoped, tag = 'internal scratch']
  %s0 = inlined_call_operand.vmem [shape: f32[2,64,4], index: 0, kind: input, shape index: {}]
  %s1 = inlined_call_operand.vmem [shape: f32[2,4,128], index: 1, kind: input, shape index: {}]
  %s2 = inlined_call_operand.vmem [shape: f32[2,64,1], index: 2, kind: output, shape index: {}]
  %s3 = sld [smem:[#allocation0]]
  $region52: #{tpu_custom_call.1} parent=0
    _
  %s5 = ssub.s32 1, %s3
  %s6 = scalar_select 0, %s5, %s3
  loop: start=0, step=1, limit=4
  $region2: #{tpu_custom_call.1} parent=0 // loop_pre_header
    _
  $region3: #{tpu_custom_call.1} parent=0 // loop_header
    %s8 = sphi 0, %s12
    %p9 = scmp.ge.s32.totalorder %s8, 4
    %s15 = sphi 0, %s34
    %s16 = sphi 0, %s30
    %s17 = sphi 0, %s26
    %s18 = sphi 0, %s15
    %s19 = sphi 0, %s16
    %s20 = sphi 0, %s17
    %s21 = sphi 0, %s18
    %s22 = sphi 0, %s19
    %s23 = sphi 0, %s20
    %s39 = sphi 0, %s41
    %s42 = sphi 0, %s39
    %s43 = sphi 0, %s42
    %s59 = sphi 0, %s43
    %s67 = sphi 0, %s69
    %s70 = sphi 0, %s67
    %s71 = sphi 0, %s70
    %s87 = sphi 0, %s71
    %s95 = sphi 0, %s97
    %s98 = sphi 0, %s95
    %s99 = sphi 0, %s98
    %s115 = sphi 0, %s99
  $region4: #{tpu_custom_call.1} parent=0 // loop_header_branch
    %11 = sbr.rel (%p9) target = $region8
  $region5: #{tpu_custom_call.1} parent=0 // loop_body
    %s13 = ssub.s32 %s8, 1
    %s14 = ssub.s32 %s8, 2
    %s24 = sadd.s32 1, %s17
    %p25 = scmp.ge.s32.totalorder %s24, 1
    %s26 = scalar_select %p25, 0, %s24
    %s27 = sadd.s32 1, %s16
    %s28 = scalar_select %p25, %s27, %s16
    %p29 = scmp.ge.s32.totalorder %s28, 1
    %s30 = scalar_select %p29, 0, %s28
    %s31 = sadd.s32 1, %s15
    %s32 = scalar_select %p29, %s31, %s15
    %p33 = scmp.ge.s32.totalorder %s32, 2
    %s34 = scalar_select %p33, 0, %s32
    %s35 = ssub.s32 %s15, %s34
    %s36 = ssub.s32 %s16, %s30
    %s37 = sor.u32 %s35, %s36
    %p38 = scmp.eq.s32.totalorder %s37, 0
    %s40 = sadd.s32 %s39, 1
    %s41 = scalar_select %p38, %s39, %s40
    %p44 = pneg %p38
    %p45 = scmp.eq.s32.totalorder %s8, 1
    %p46 = por %p44, %p45
    %p47 = scmp.ne.s32.totalorder %s39, %s42
    %p48 = scmp.eq.s32.totalorder %s8, 0
    %p49 = por %p47, %p48
    %p50 = scmp.ne.s32.totalorder %s39, %s42
    %p51 = scmp.eq.s32.totalorder %s13, 1
    %p52 = por %p50, %p51
    %p53 = scmp.ne.s32.totalorder %s42, %s43
    %p54 = scmp.eq.s32.totalorder %s13, 0
    %p55 = por %p53, %p54
    %p56 = scmp.ne.s32.totalorder %s42, %s43
    %p57 = scmp.eq.s32.totalorder %s14, 1
    %p58 = por %p56, %p57
    %p60 = scmp.ne.s32.totalorder %s43, %s59
    %p61 = scmp.eq.s32.totalorder %s14, 0
    %p62 = por %p60, %p61
    %s63 = ssub.s32 %s15, %s34
    %s64 = ssub.s32 %s17, %s26
    %s65 = sor.u32 %s63, %s64
    %p66 = scmp.eq.s32.totalorder %s65, 0
    %s68 = sadd.s32 %s67, 1
    %s69 = scalar_select %p66, %s67, %s68
    %p72 = pneg %p66
    %p73 = scmp.eq.s32.totalorder %s8, 1
    %p74 = por %p72, %p73
    %p75 = scmp.ne.s32.totalorder %s67, %s70
    %p76 = scmp.eq.s32.totalorder %s8, 0
    %p77 = por %p75, %p76
    %p78 = scmp.ne.s32.totalorder %s67, %s70
    %p79 = scmp.eq.s32.totalorder %s13, 1
    %p80 = por %p78, %p79
    %p81 = scmp.ne.s32.totalorder %s70, %s71
    %p82 = scmp.eq.s32.totalorder %s13, 0
    %p83 = por %p81, %p82
    %p84 = scmp.ne.s32.totalorder %s70, %s71
    %p85 = scmp.eq.s32.totalorder %s14, 1
    %p86 = por %p84, %p85
    %p88 = scmp.ne.s32.totalorder %s71, %s87
    %p89 = scmp.eq.s32.totalorder %s14, 0
    %p90 = por %p88, %p89
    %s91 = ssub.s32 %s15, %s34
    %s92 = ssub.s32 %s16, %s30
    %s93 = sor.u32 %s91, %s92
    %p94 = scmp.eq.s32.totalorder %s93, 0
    %s96 = sadd.s32 %s95, 1
    %s97 = scalar_select %p94, %s95, %s96
    %p100 = pneg %p94
    %p101 = scmp.eq.s32.totalorder %s8, 1
    %p102 = por %p100, %p101
    %p103 = scmp.ne.s32.totalorder %s95, %s98
    %p104 = scmp.eq.s32.totalorder %s8, 0
    %p105 = por %p103, %p104
    %p106 = scmp.ne.s32.totalorder %s95, %s98
    %p107 = scmp.eq.s32.totalorder %s13, 1
    %p108 = por %p106, %p107
    %p109 = scmp.ne.s32.totalorder %s98, %s99
    %p110 = scmp.eq.s32.totalorder %s13, 0
    %p111 = por %p109, %p110
    %p112 = scmp.ne.s32.totalorder %s98, %s99
    %p113 = scmp.eq.s32.totalorder %s14, 1
    %p114 = por %p112, %p113
    %p116 = scmp.ne.s32.totalorder %s99, %s115
    %p117 = scmp.eq.s32.totalorder %s14, 0
    %p118 = por %p116, %p117
    %p119 = scmp.le.s32.totalorder 1, %s8
    %p120 = scmp.lt.s32.totalorder %s8, 3
    %p121 = pnand %p119, %p120
    %p122 = pneg %p121
    // Predicated region
    $region9: #{tpu_custom_call.1} parent=5 // pred_check
      _
    $region10: #{tpu_custom_call.1} parent=5 // pred_check_branch
      %124 = sbr.rel (%p121) target = $region12
    $region11: #{tpu_custom_call.1} parent=5 // pred_region
      %s125 = ssub.s32 %s8, 1
    $region12: #{tpu_custom_call.1} parent=5 // pred_fallthru
      _
    %p126 = scmp.lt.s32.totalorder %s8, 2
    // Predicated region
    $region13: #{tpu_custom_call.1} parent=5 // pred_check
      %p127 = pneg %p126
    $region14: #{tpu_custom_call.1} parent=5 // pred_check_branch
      %129 = sbr.rel (%p127) target = $region16
    $region15: #{tpu_custom_call.1} parent=5 // pred_region
      // Predicated region
      $region17: #{tpu_custom_call.1} parent=15 // pred_check
        %p130 = pneg %p49
      $region18: #{tpu_custom_call.1} parent=15 // pred_check_branch
        %132 = sbr.rel (%p130) target = $region20
      $region19: #{tpu_custom_call.1} parent=15 // pred_region
        %s133 = smul.u32 8, %s16
        %p134 = scmp.lt.s32.totalorder %s15, 1
        %s135 = scalar_select %p134, %s15, 1
        %p136 = scmp.lt.s32.totalorder %s133, 7
        %s137 = scalar_select %p136, %s133, 7
        %s138 = smul.addr %s135, 8
        %s139 = sadd.s32 %s137, %s138
        %s140 = smul.addr %s139, 8
        %s141 = scalar_lea.vmem %s0, %s140
        %s142 = smul.u32 8, %s16
      $region20: #{tpu_custom_call.1} parent=15 // pred_fallthru
        _
      // Predicated region
      $region21: #{tpu_custom_call.1} parent=15 // pred_check
        %p143 = pneg %p77
      $region22: #{tpu_custom_call.1} parent=15 // pred_check_branch
        %145 = sbr.rel (%p143) target = $region24
      $region23: #{tpu_custom_call.1} parent=15 // pred_region
        %p146 = scmp.lt.s32.totalorder %s15, 1
        %s147 = scalar_select %p146, %s15, 1
        %p148 = scmp.lt.s32.totalorder %s17, 0
        %s149 = scalar_select %p148, %s17, 0
        %s150 = sadd.s32 %s149, %s147
        %s151 = smul.addr %s150, 4
        %s152 = scalar_lea.vmem %s1, %s151
      $region24: #{tpu_custom_call.1} parent=15 // pred_fallthru
        _
    $region16: #{tpu_custom_call.1} parent=5 // pred_fallthru
      _
    %p153 = scmp.le.s32.totalorder 1, %s8
    %p154 = scmp.lt.s32.totalorder %s8, 3
    %p155 = pnand %p153, %p154
    %p156 = pneg %p155
    // Predicated region
    $region25: #{tpu_custom_call.1} parent=5 // pred_check
      _
    $region26: #{tpu_custom_call.1} parent=5 // pred_check_branch
      %158 = sbr.rel (%p155) target = $region28
    $region27: #{tpu_custom_call.1} parent=5 // pred_region
      %s159 = ssub.s32 %s8, 1
      %s160 = smul.u32 8, %s19
      %p161 = scmp.lt.s32.totalorder %s18, 1
      %s162 = scalar_select %p161, %s18, 1
      %p163 = scmp.lt.s32.totalorder %s160, 7
      %s164 = scalar_select %p163, %s160, 7
      %s165 = smul.addr %s162, 8
      %s166 = sadd.s32 %s164, %s165
      %s167 = smul.addr %s166, 8
      %s168 = scalar_lea.vmem %s0, %s167
      %p169 = pneg %p55
      %p170 = pneg %p52
      %p171 = scmp.lt.s32.totalorder %s18, 1
      %s172 = scalar_select %p171, %s18, 1
      %p173 = scmp.lt.s32.totalorder %s20, 0
      %s174 = scalar_select %p173, %s20, 0
      %s175 = sadd.s32 %s174, %s172
      %s176 = smul.addr %s175, 4
      %s177 = scalar_lea.vmem %s1, %s176
      %p178 = pneg %p83
      %p179 = pneg %p80
      %p180 = pneg %p111
      %p181 = pneg %p108
      %s182 = smul.u32 8, %s19
      %p183 = scmp.lt.s32.totalorder %s18, 1
      %s184 = scalar_select %p183, %s18, 1
      %p185 = scmp.lt.s32.totalorder %s182, 7
      %s186 = scalar_select %p185, %s182, 7
      %s187 = smul.addr %s184, 8
      %s188 = sadd.s32 %s186, %s187
      %s189 = smul.addr %s188, 8
      %s190 = scalar_lea.vmem %s2, %s189
      %s191 = smul.u32 8, %s19
      %p192 = scmp.lt.s32.totalorder %s18, 1
      %s193 = scalar_select %p192, %s18, 1
      %p194 = scmp.lt.s32.totalorder %s191, 7
      %s195 = scalar_select %p194, %s191, 7
      %s196 = smul.addr %s193, 8
      %s197 = sadd.s32 %s195, %s196
      %s198 = smul.addr %s197, 8
      %s199 = scalar_lea.vmem %s0, %s198
      %s200 = smul.u32 8, %s19
      %p201 = scmp.lt.s32.totalorder %s18, 1
      %s202 = scalar_select %p201, %s18, 1
      %p203 = scmp.lt.s32.totalorder %s20, 0
      %s204 = scalar_select %p203, %s20, 0
      %s205 = sadd.s32 %s204, %s202
      %s206 = smul.addr %s205, 4
      %s207 = scalar_lea.vmem %s1, %s206
      %s208 = smul.u32 8, %s19
      %p209 = scmp.lt.s32.totalorder %s18, 1
      %s210 = scalar_select %p209, %s18, 1
      %p211 = scmp.lt.s32.totalorder %s208, 7
      %s212 = scalar_select %p211, %s208, 7
      %s213 = smul.addr %s210, 8
      %s214 = sadd.s32 %s212, %s213
      %s215 = smul.addr %s214, 8
      %s216 = scalar_lea.vmem %s2, %s215
      %s217 = smul.u32 8, %s19
      %p218 = scmp.eq.s32.totalorder %s20, 0
      // Predicated region
      $region29: #{tpu_custom_call.1} parent=27 // pred_check
        %p219 = pneg %p218
      $region30: #{tpu_custom_call.1} parent=27 // pred_check_branch
        %221 = sbr.rel (%p219) target = $region32
      $region31: #{tpu_custom_call.1} parent=27 // pred_region
        %vm222 = vcmask 7168
        %223 = vst.msk [vmem:[%s216] sm:$0xff] %vm222, inf
        %224 = vst.msk [vmem:[%s216 + $0x8] sm:$0xff] %vm222, inf
        %225 = vst.msk [vmem:[%s216 + $0x10] sm:$0xff] %vm222, inf
        %226 = vst.msk [vmem:[%s216 + $0x18] sm:$0xff] %vm222, inf
        %227 = vst.msk [vmem:[%s216 + $0x20] sm:$0xff] %vm222, inf
        %228 = vst.msk [vmem:[%s216 + $0x28] sm:$0xff] %vm222, inf
        %229 = vst.msk [vmem:[%s216 + $0x30] sm:$0xff] %vm222, inf
        %230 = vst.msk [vmem:[%s216 + $0x38] sm:$0xff] %vm222, inf
      $region32: #{tpu_custom_call.1} parent=27 // pred_fallthru
        _
      %v231 = vld [vmem:[%s207] sm:$0x1]
      %v232 = vld [vmem:[%s207 + $0x1] sm:$0x1]
      %v233 = vld [vmem:[%s207 + $0x2] sm:$0x1]
      %v234 = vld [vmem:[%s207 + $0x3] sm:$0x1]
      loop: start=0, step=1, limit=8
      $region33: #{tpu_custom_call.1} parent=27 // loop_pre_header
        _
      $region34: #{tpu_custom_call.1} parent=27 // loop_header
        %s236 = sphi 0, %s240
        %p237 = scmp.ge.s32.totalorder %s236, 8
      $region35: #{tpu_custom_call.1} parent=27 // loop_header_branch
        %239 = sbr.rel (%p237) target = $region39
      $region36: #{tpu_custom_call.1} parent=27 // loop_body
        %s241 = smul.u32 %s236, 8
        %s242 = scalar_lea.vmem %s199, %s241
        %v243 = vld [vmem:[%s242] sm:$0xff]
        %245 = vset.pattern.permute.xlu0 0
        %246 = vperm.xlu0 %245, %v243
        %v247 = vpop.permute.xlu0 %246
        %v249 = vlaneseq
        %v250 = vshrl.u32 %v249, 7
        %v251 = vsub.s32 0, %v250
        %v252 = vrot.slane %v231, %v251
        %v253 = vmul.f32 %v247, %v252
        %254 = vset.pattern.permute.xlu0 1
        %255 = vperm.xlu0 %254, %v243
        %v256 = vpop.permute.xlu0 %255
        %v258 = vlaneseq
        %v259 = vshrl.u32 %v258, 7
        %v260 = vsub.s32 0, %v259
        %v261 = vrot.slane %v232, %v260
        %v262 = vmul.f32 %v256, %v261
        %v263 = vadd.f32 %v253, %v262
        %264 = vset.pattern.permute.xlu0 2
        %265 = vperm.xlu0 %264, %v243
        %v266 = vpop.permute.xlu0 %265
        %v268 = vlaneseq
        %v269 = vshrl.u32 %v268, 7
        %v270 = vsub.s32 0, %v269
        %v271 = vrot.slane %v233, %v270
        %v272 = vmul.f32 %v266, %v271
        %v273 = vadd.f32 %v263, %v272
        %v274 = vlaneseq
        %v275 = vshrl.u32 %v274, 7
        %v276 = vsub.s32 0, %v275
        %v277 = vrot.slane %v234, %v276
        %v278 = vadd.f32 %v273, %v277
        %279 = vmin.xlane.f32.xlu0 %v278
        %v280 = vpop.xlane.xlu0 %279
        %s281 = scalar_lea.vmem %s216, %s241
        %v282 = vld [vmem:[%s281] sm:$0xff]
        %v283 = vmin.f32 %v282, %v280
        %vm284 = vcmask 7168
        %285 = vst.msk [vmem:[%s281] sm:$0xff] %vm284, %v283
      $region37: #{tpu_custom_call.1} parent=27 // loop_footer
        %s240 = sadd.s32 1, %s236
      $region38: #{tpu_custom_call.1} parent=27 // loop_footer_branch
        %235 = sbr.rel target = $region34
      $region39: #{tpu_custom_call.1} parent=27 // loop_exit
        _
      %s286 = smul.u32 8, %s19
      %p287 = scmp.lt.s32.totalorder %s18, 1
      %s288 = scalar_select %p287, %s18, 1
      %p289 = scmp.lt.s32.totalorder %s286, 7
      %s290 = scalar_select %p289, %s286, 7
      %s291 = smul.addr %s288, 8
      %s292 = sadd.s32 %s290, %s291
      %s293 = smul.addr %s292, 8
      %s294 = scalar_lea.vmem %s2, %s293
      // Predicated region
      $region40: #{tpu_custom_call.1} parent=27 // pred_check
        %p295 = pneg %p108
      $region41: #{tpu_custom_call.1} parent=27 // pred_check_branch
        %297 = sbr.rel (%p295) target = $region43
      $region42: #{tpu_custom_call.1} parent=27 // pred_region
        %s298 = smul.u32 8, %s19
      $region43: #{tpu_custom_call.1} parent=27 // pred_fallthru
        _
    $region28: #{tpu_custom_call.1} parent=5 // pred_fallthru
      _
    %p299 = scmp.le.s32.totalorder 2, %s8
    // Predicated region
    $region44: #{tpu_custom_call.1} parent=5 // pred_check
      %p300 = pneg %p299
    $region45: #{tpu_custom_call.1} parent=5 // pred_check_branch
      %302 = sbr.rel (%p300) target = $region47
    $region46: #{tpu_custom_call.1} parent=5 // pred_region
      %s303 = ssub.s32 %s8, 2
      // Predicated region
      $region48: #{tpu_custom_call.1} parent=46 // pred_check
        %p304 = pneg %p114
      $region49: #{tpu_custom_call.1} parent=46 // pred_check_branch
        %306 = sbr.rel (%p304) target = $region51
      $region50: #{tpu_custom_call.1} parent=46 // pred_region
        %s307 = smul.u32 8, %s22
        %p308 = scmp.lt.s32.totalorder %s21, 1
        %s309 = scalar_select %p308, %s21, 1
        %p310 = scmp.lt.s32.totalorder %s307, 7
        %s311 = scalar_select %p310, %s307, 7
        %s312 = smul.addr %s309, 8
        %s313 = sadd.s32 %s311, %s312
        %s314 = smul.addr %s313, 8
        %s315 = scalar_lea.vmem %s2, %s314
      $region51: #{tpu_custom_call.1} parent=46 // pred_fallthru
        _
    $region47: #{tpu_custom_call.1} parent=5 // pred_fallthru
      _
  $region6: #{tpu_custom_call.1} parent=0 // loop_footer
    %s12 = sadd.s32 1, %s8
  $region7: #{tpu_custom_call.1} parent=0 // loop_footer_branch
    %7 = sbr.rel target = $region3
  $region8: #{tpu_custom_call.1} parent=0 // loop_exit
    _

</llo_original>
